<compile_context>
chip_gen: v6e
topology: v6e:2x2x1
jax: 0.10.0
libtpu: 0.0.40
codegen_flags: <defaults>
</compile_context>

<pallas_src>
import functools

import jax
import jax.numpy as jnp
from jax.experimental import pallas as pl
from jax.experimental.pallas import tpu as pltpu

HIDDEN = 2048   # self.memory_size
PENUL = 1024    # self.penul


# ----------------------------------------------------------------------------
# Generic fused dense (+ bias + optional ReLU), tiled over the output dim.
# Weights are bf16 (in, out); activations in/out are f32; MXU accumulates in f32.
# ----------------------------------------------------------------------------
def _dense_kernel(x_ref, w_ref, b_ref, o_ref, *, activation):
    acc = jnp.dot(x_ref[...].astype(w_ref.dtype), w_ref[...],
                  preferred_element_type=jnp.float32)
    acc = acc + b_ref[...]
    if activation == "relu":
        acc = jnp.maximum(acc, 0.0)
    o_ref[...] = acc.astype(o_ref.dtype)


def dense(x, w, b, activation="none", tn=2048):
    """x: (M, K) f32, w: (K, N) bf16, b: (N,) f32 -> (M, N) f32."""
    M, K = x.shape
    K2, N = w.shape
    assert K == K2
    if N < tn or N % tn != 0:
        tn = N  # small / irregular output dims -> single block
    b2 = b.reshape(1, N).astype(jnp.float32)
    return pl.pallas_call(
        functools.partial(_dense_kernel, activation=activation),
        out_shape=jax.ShapeDtypeStruct((M, N), jnp.float32),
        grid=(N // tn,),
        in_specs=[
            pl.BlockSpec((M, K), lambda j: (0, 0)),
            pl.BlockSpec((K, tn), lambda j: (0, j)),
            pl.BlockSpec((1, tn), lambda j: (0, j)),
        ],
        out_specs=pl.BlockSpec((M, tn), lambda j: (0, j)),
        compiler_params=pltpu.CompilerParams(
            dimension_semantics=("parallel",),
            vmem_limit_bytes=48 * 1024 * 1024,
        ),
    )(x.astype(jnp.float32), w, b2)


# ----------------------------------------------------------------------------
# GRU recurrence kernel, grid = (T,).
# Gate inputs gx_t = x_t @ W_ih.T + b_ih + [b_hr | b_hz | 0] are precomputed.
# Per step:
#   hh  = h_{t-1} @ [W_hr.T | W_hz.T | W_hn.T]           (one (B,H)@(H,3H) MXU matmul)
#   r   = sigmoid(gx_r + hh_r)
#   z   = sigmoid(gx_z + hh_z)
#   n   = tanh  (gx_n + r * (hh_n + b_hn))
#   h_t = (1 - z) * n + z * h_{t-1}
# The concatenated recurrent weight is bf16 and its BlockSpec index is constant,
# so it is DMA'd once and stays resident in VMEM across all timesteps.
# ----------------------------------------------------------------------------
def _gru_kernel(h0_ref, gx_ref, whh_ref, bhn_ref, out_ref, h_prev):
    H = h0_ref.shape[1]

    @pl.when(pl.program_id(0) == 0)
    def _():
        h_prev[...] = h0_ref[...]

    hp = h_prev[...]                                              # (B, H) f32
    hh = jnp.dot(hp.astype(whh_ref.dtype), whh_ref[...],
                 preferred_element_type=jnp.float32)              # (B, 3H) f32
    gx = gx_ref[0]                                                # (B, 3H) f32

    r = jax.nn.sigmoid(gx[:, 0:H] + hh[:, 0:H])
    z = jax.nn.sigmoid(gx[:, H:2 * H] + hh[:, H:2 * H])
    n = jnp.tanh(gx[:, 2 * H:3 * H] + r * (hh[:, 2 * H:3 * H] + bhn_ref[...]))

    h_new = (1.0 - z) * n + z * hp
    out_ref[0] = h_new
    h_prev[...] = h_new


def gru_forward(gx, whh, bhn, h0):
    """gx: (T, B, 3H) f32; whh: (H, 3H) bf16; bhn: (1, H) f32; h0: (B, H) f32.
       Returns h_all: (T, B, H) f32."""
    T, B, H3 = gx.shape
    H = H3 // 3
    return pl.pallas_call(
        _gru_kernel,
        out_shape=jax.ShapeDtypeStruct((T, B, H), jnp.float32),
        grid=(T,),
        in_specs=[
            pl.BlockSpec((B, H), lambda t: (0, 0)),            # h0 (fetched once)
            pl.BlockSpec((1, B, 3 * H), lambda t: (t, 0, 0)),  # gate inputs per step
            pl.BlockSpec((H, 3 * H), lambda t: (0, 0)),        # recurrent weights (resident)
            pl.BlockSpec((1, H), lambda t: (0, 0)),            # b_hn
        ],
        out_specs=pl.BlockSpec((1, B, H), lambda t: (t, 0, 0)),
        scratch_shapes=[
            pltpu.VMEM((B, H), jnp.float32),   # h_prev (persists across timesteps)
        ],
        compiler_params=pltpu.CompilerParams(
            dimension_semantics=("arbitrary",),
            vmem_limit_bytes=56 * 1024 * 1024,   # fits v7x's 64 MiB physical VMEM
        ),
    )(h0, gx, whh, bhn)


# ----------------------------------------------------------------------------
# Fused post-GRU tail: relu(x @ w3 + b3) @ wp + bp, all in one kernel so the
# (BT, 1024) intermediate never touches HBM.
# ----------------------------------------------------------------------------
def _tail_kernel(x_ref, w3_ref, b3_ref, wp_ref, bp_ref, o_ref):
    h = jnp.dot(x_ref[...].astype(w3_ref.dtype), w3_ref[...],
                preferred_element_type=jnp.float32) + b3_ref[...]
    h = jnp.maximum(h, 0.0)
    p = jnp.dot(h.astype(wp_ref.dtype), wp_ref[...],
                preferred_element_type=jnp.float32) + bp_ref[...]
    o_ref[...] = p.astype(o_ref.dtype)


def tail(x, w3, b3, wp, bp):
    """x: (M, H) f32; w3: (H, P) bf16; wp: (P, N) bf16 -> (M, N) f32."""
    M, K = x.shape
    P = w3.shape[1]
    N = wp.shape[1]
    return pl.pallas_call(
        _tail_kernel,
        out_shape=jax.ShapeDtypeStruct((M, N), jnp.float32),
        grid=(1,),
        in_specs=[
            pl.BlockSpec((M, K), lambda i: (0, 0)),
            pl.BlockSpec((K, P), lambda i: (0, 0)),
            pl.BlockSpec((1, P), lambda i: (0, 0)),
            pl.BlockSpec((P, N), lambda i: (0, 0)),
            pl.BlockSpec((1, N), lambda i: (0, 0)),
        ],
        out_specs=pl.BlockSpec((M, N), lambda i: (0, 0)),
        compiler_params=pltpu.CompilerParams(
            dimension_semantics=("arbitrary",),
            vmem_limit_bytes=48 * 1024 * 1024,
        ),
    )(x.astype(jnp.float32), w3, b3.reshape(1, P).astype(jnp.float32),
      wp, bp.reshape(1, N).astype(jnp.float32))


# ----------------------------------------------------------------------------
# Parameter init (deterministic, PyTorch-style uniform(-1/sqrt(fan_in), ...)).
# Weight matrices stored pre-transposed as (in, out) in bf16; biases f32.
# ----------------------------------------------------------------------------
def _uniform(key, shape, fan_in, dtype=jnp.float32):
    bound = 1.0 / jnp.sqrt(jnp.float32(fan_in))
    return jax.random.uniform(key, shape, jnp.float32, -bound, bound).astype(dtype)


def init_params(key, input_size, n_primary=3):
    ks = list(jax.random.split(key, 12))
    wdt = jnp.bfloat16
    p = {}
    p["w1"] = _uniform(ks[0], (input_size, PENUL), input_size, wdt)
    p["b1"] = _uniform(ks[1], (PENUL,), input_size)
    p["w2"] = _uniform(ks[2], (PENUL, HIDDEN), PENUL, wdt)
    p["b2"] = _uniform(ks[3], (HIDDEN,), PENUL)
    # GRU: W_ih.T (in, 3H) and concatenated [W_hr.T | W_hz.T | W_hn.T] (H, 3H),
    # gate order [r | z | n] as in PyTorch.
    p["w_ih_t"] = _uniform(ks[4], (HIDDEN, 3 * HIDDEN), HIDDEN, wdt)
    p["b_ih"] = _uniform(ks[5], (3 * HIDDEN,), HIDDEN)
    p["w_hh_t"] = _uniform(ks[6], (HIDDEN, 3 * HIDDEN), HIDDEN, wdt)
    p["b_hh"] = _uniform(ks[7], (3 * HIDDEN,), HIDDEN)
    p["w3"] = _uniform(ks[8], (HIDDEN, PENUL), HIDDEN, wdt)
    p["b3"] = _uniform(ks[9], (PENUL,), HIDDEN)
    # n_primary independent (penul -> 1) heads stacked into one (penul, n_primary) matrix.
    p["wp"] = _uniform(ks[10], (PENUL, n_primary), PENUL, wdt)
    p["bp"] = _uniform(ks[11], (n_primary,), PENUL)
    return p


# ----------------------------------------------------------------------------
# Forward pass matching single_net.forward (n_primary=3, n_aux=0).
# ----------------------------------------------------------------------------
def single_net_forward(params, x, h=None):
    B, T, F = x.shape
    H = HIDDEN
    xf = x.reshape(B * T, F).astype(jnp.float32)

    out = dense(xf, params["w1"], params["b1"], "relu")        # (BT, 1024)
    out = dense(out, params["w2"], params["b2"], "relu")       # (BT, 2048)

    # GRU gate-input projection; fold b_hr / b_hz into the bias so the recurrent
    # kernel only needs b_hn.
    b_hh = params["b_hh"]
    b_gate = params["b_ih"] + jnp.concatenate(
        [b_hh[0:H], b_hh[H:2 * H], jnp.zeros((H,), jnp.float32)])
    gx = dense(out, params["w_ih_t"], b_gate, "none")          # (BT, 3H) order [r|z|n]
    gx = gx.reshape(B, T, 3 * H).transpose(1, 0, 2)            # (T, B, 3H)

    if h is None:
        h0 = jnp.zeros((B, H), jnp.float32)
    else:
        h0 = h[0].astype(jnp.float32)
    bhn = b_hh[2 * H:3 * H].reshape(1, H)

    h_all = gru_forward(gx, params["w_hh_t"], bhn, h0)         # (T, B, H)
    h_next = h_all[-1][None]                                   # (1, B, H)
    out = h_all.transpose(1, 0, 2).reshape(B * T, H)           # (BT, H)

    prim = tail(out, params["w3"], params["b3"],
                params["wp"], params["bp"])                    # (BT, 3)
    out_primary = prim.reshape(B, T, -1)                       # (B, T, 3)

    # n_aux = 0 -> empty aux output, same shape convention as the torch module.
    out_aux = jnp.zeros((0, B, T, 1), jnp.float32)

    # Module returns only the second primary head, unsqueezed to (B, T, 1).
    return out_primary[:, :, 1:2], out_aux, h_next


if __name__ == "__main__":
    key = jax.random.PRNGKey(0)
    k_param, k_x = jax.random.split(key)

    B, T, F = 2, 8, 32
    params = init_params(k_param, input_size=F, n_primary=3)
    x = jax.random.normal(k_x, (B, T, F), jnp.float32)

    out1, out_aux, h_next = single_net_forward(params, x, h=None)
    jax.block_until_ready((out1, out_aux, h_next))

    assert out1.shape == (B, T, 1)
    assert out_aux.shape == (0, B, T, 1)
    assert h_next.shape == (1, B, HIDDEN)
    assert bool(jnp.all(jnp.isfinite(out1))) and bool(jnp.all(jnp.isfinite(h_next)))
    print("KERNEL_OK")
</pallas_src>

<mosaic_0001>
module attributes {stable_mosaic.version = 11 : i64} {
  func.func @_dense_kernel(%arg0: i32, %arg1: memref<16x32xf32, #tpu.memory_space<vmem>>, %arg2: memref<32x1024xbf16, #tpu.memory_space<vmem>>, %arg3: memref<1x1024xf32, #tpu.memory_space<vmem>>, %arg4: memref<16x1024xf32, #tpu.memory_space<vmem>>) attributes {dimension_semantics = [#tpu.dimension_semantics<parallel>], iteration_bounds = array<i64: 1>, scalar_prefetch = 0 : i64, scratch_operands = 0 : i64, tpu.core_type = #tpu.core_type<tc>, window_params = [{pipeline_mode = #tpu.pipeline_mode<synchronous>, transform_indices = @transform_0, window_bounds = array<i64: 16, 32>}, {transform_indices = @transform_1, window_bounds = array<i64: 32, 1024>}, {transform_indices = @transform_2, window_bounds = array<i64: 1, 1024>}, {transform_indices = @transform_3, window_bounds = array<i64: 16, 1024>}]} {
    %c0 = arith.constant 0 : index
    %c0_0 = arith.constant 0 : index
    %0 = vector.load %arg1[%c0, %c0_0] : memref<16x32xf32, #tpu.memory_space<vmem>>, vector<16x32xf32>
    %1 = arith.truncf %0 : vector<16x32xf32> to vector<16x32xbf16>
    %c0_1 = arith.constant 0 : index
    %c0_2 = arith.constant 0 : index
    %2 = vector.load %arg2[%c0_1, %c0_2] : memref<32x1024xbf16, #tpu.memory_space<vmem>>, vector<32x1024xbf16>
    %cst = arith.constant dense<0.000000e+00> : vector<16x1024xf32>
    %3 = tpu.matmul %1, %2, %cst {dimension_numbers = #tpu.dot_dimension_numbers<[1], [0], [0], [1], [0, 0, 1, 1], [], []>} : vector<16x32xbf16>, vector<32x1024xbf16>, vector<16x1024xf32> -> vector<16x1024xf32>
    %c0_3 = arith.constant 0 : index
    %c0_4 = arith.constant 0 : index
    %4 = vector.load %arg3[%c0_3, %c0_4] : memref<1x1024xf32, #tpu.memory_space<vmem>>, vector<1x1024xf32>
    %5 = vector.broadcast %4 : vector<1x1024xf32> to vector<16x1024xf32>
    %6 = arith.addf %3, %5 : vector<16x1024xf32>
    %cst_5 = arith.constant 0.000000e+00 : f32
    %7 = vector.broadcast %cst_5 : f32 to vector<16x1024xf32>
    %8 = arith.maximumf %6, %7 : vector<16x1024xf32>
    %c0_6 = arith.constant 0 : index
    %c0_7 = arith.constant 0 : index
    %9 = vector.load %arg4[%c0_6, %c0_7] : memref<16x1024xf32, #tpu.memory_space<vmem>>, vector<16x1024xf32>
    tpu.vector_store %arg4[%c0_6, %c0_7], %8 {strides = array<i32>} : memref<16x1024xf32, #tpu.memory_space<vmem>>, vector<16x1024xf32>,
    return
  }
  func.func @transform_0(%arg0: i32) -> (i32, i32) {
    %c0_i32 = arith.constant 0 : i32
    %c0_i32_0 = arith.constant 0 : i32
    %c0_i32_1 = arith.constant 0 : i32
    return %c0_i32, %c0_i32_0 : i32, i32
  }
  func.func @transform_1(%arg0: i32) -> (i32, i32) {
    %c0_i32 = arith.constant 0 : i32
    %c0_i32_0 = arith.constant 0 : i32
    return %c0_i32, %arg0 : i32, i32
  }
  func.func @transform_2(%arg0: i32) -> (i32, i32) {
    %c0_i32 = arith.constant 0 : i32
    %c0_i32_0 = arith.constant 0 : i32
    return %c0_i32, %arg0 : i32, i32
  }
  func.func @transform_3(%arg0: i32) -> (i32, i32) {
    %c0_i32 = arith.constant 0 : i32
    %c0_i32_0 = arith.constant 0 : i32
    return %c0_i32, %arg0 : i32, i32
  }
}

</mosaic_0001>

<llo_original>
// kernel: tpu_custom_call.1
$region0: #{tpu_custom_call.1}
  #allocation0 [shape = 'u32[]', space=smem, size = 0x4, offset = 0x4, fixed_abs, tag = 'smem constant byte address 0x4 - core index']
  #allocation1 [shape = 'u32[144,128]{1,0:T(1,128)}', space=vmem, size = 0x12000, scoped, tag = 'internal scratch']
  %s0 = inlined_call_operand.hbm [shape: f32[16,32], index: 0, kind: input, shape index: {}]
  %s1 = inlined_call_operand.hbm [shape: bf16[32,1024], index: 1, kind: input, shape index: {}]
  %s2 = inlined_call_operand.hbm [shape: f32[1,1024], index: 2, kind: input, shape index: {}]
  %s3 = inlined_call_operand.hbm [shape: f32[16,1024], index: 3, kind: output, shape index: {}]
  %s4 = sld [smem:[#allocation0]]
  $region34: #{tpu_custom_call.1} parent=0
    _
  %s6 = ssub.s32 1, %s4
  %s7 = scalar_select 0, %s6, %s4
  $region1: #{tpu_custom_call.1} parent=0
    #allocation2 [shape = 'u8[8192]{0}', space=vmem, size = 0x2000, scoped, tag = 'input window, operand 0, single buffered']
    #allocation3 [shape = 's32[1]{0}', space=sflag, size = 0x4, scoped, tag = 'scoped memory for tpu_custom_call.1']
    #allocation4 [shape = 's32[1]{0}', space=sflag, size = 0x4, scoped, tag = 'scoped memory for tpu_custom_call.1']
    #allocation5 [shape = 'u8[65536]{0}', space=vmem, size = 0x10000, scoped, tag = 'input window, operand 1, single buffered']
    #allocation6 [shape = 's32[1]{0}', space=sflag, size = 0x4, scoped, tag = 'scoped memory for tpu_custom_call.1']
    #allocation7 [shape = 'u8[4096]{0}', space=vmem, size = 0x1000, scoped, tag = 'input window, operand 2, single buffered']
    #allocation8 [shape = 'u8[65536]{0}', space=vmem, size = 0x10000, scoped, tag = 'output window, operand 0, single buffered']
    %8 = vsyncpa [#allocation3], 0
    %9 = vsyncpa [#allocation6], 0
    %10 = vsyncpa [#allocation4], 0
    // Predicated region
    $region2: #{tpu_custom_call.1} parent=1 // pred_check
      _
    $region3: #{tpu_custom_call.1} parent=1 // pred_check_branch
      %12 = sbr.rel (0) target = $region5
    $region4: #{tpu_custom_call.1} parent=1 // pred_region
      %s14 = ssub.s32 256, 256
      %15 = vsyncadd [#allocation3], %s14
      %s16 = sshll.u32 [#allocation2], 4
      %s17 = int_to_ptr.vmem [resolvable:$true] %s16
      %22 = dma.hbm_to_vmem [thread:$0]  %s0, 256, %s17, [#allocation3], 128, 128, 8
    $region5: #{tpu_custom_call.1} parent=1 // pred_fallthru
      _
    // Predicated region
    $region6: #{tpu_custom_call.1} parent=1 // pred_check
      _
    $region7: #{tpu_custom_call.1} parent=1 // pred_check_branch
      %24 = sbr.rel (0) target = $region9
    $region8: #{tpu_custom_call.1} parent=1 // pred_region
      %s26 = ssub.s32 2048, 2048
      %27 = vsyncadd [#allocation6], %s26
      %s28 = sshll.u32 [#allocation5], 4
      %s29 = int_to_ptr.vmem [resolvable:$true] %s28
      %34 = dma.hbm_to_vmem [thread:$0]  %s1, 2048, %s29, [#allocation6], 512, 512, 32
    $region9: #{tpu_custom_call.1} parent=1 // pred_fallthru
      _
    // Predicated region
    $region10: #{tpu_custom_call.1} parent=1 // pred_check
      _
    $region11: #{tpu_custom_call.1} parent=1 // pred_check_branch
      %36 = sbr.rel (0) target = $region13
    $region12: #{tpu_custom_call.1} parent=1 // pred_region
      %s38 = ssub.s32 128, 128
      %39 = vsyncadd [#allocation6], %s38
      %s41 = sshll.u32 [#allocation7], 4
      %s42 = int_to_ptr.vmem [resolvable:$true] %s41
      %44 = dma.hbm_to_vmem [thread:$0]  %s2, 128, %s42, [#allocation6]
    $region13: #{tpu_custom_call.1} parent=1 // pred_fallthru
      _
    // Predicated region
    $region14: #{tpu_custom_call.1} parent=1 // pred_check
      _
    $region15: #{tpu_custom_call.1} parent=1 // pred_check_branch
      %46 = sbr.rel (0) target = $region17
    $region16: #{tpu_custom_call.1} parent=1 // pred_region
      %47 = dma.done [#allocation3], 256
    $region17: #{tpu_custom_call.1} parent=1 // pred_fallthru
      _
    // Predicated region
    $region18: #{tpu_custom_call.1} parent=1 // pred_check
      _
    $region19: #{tpu_custom_call.1} parent=1 // pred_check_branch
      %49 = sbr.rel (0) target = $region21
    $region20: #{tpu_custom_call.1} parent=1 // pred_region
      %50 = dma.done [#allocation6], 2048
    $region21: #{tpu_custom_call.1} parent=1 // pred_fallthru
      _
    // Predicated region
    $region22: #{tpu_custom_call.1} parent=1 // pred_check
      _
    $region23: #{tpu_custom_call.1} parent=1 // pred_check_branch
      %52 = sbr.rel (0) target = $region25
    $region24: #{tpu_custom_call.1} parent=1 // pred_region
      %53 = dma.done [#allocation6], 128
    $region25: #{tpu_custom_call.1} parent=1 // pred_fallthru
      _
    %v55 = vld [vmem:[#allocation2] sm:$0xff]
    %v56 = vld [vmem:[#allocation2 + $0x8] sm:$0xff]
    %v57 = vpack.c.bf16 %v56, %v55
    %v58 = vld [vmem:[#allocation5] sm:$0xff]
    %v59 = vld [vmem:[#allocation5 + $0x8] sm:$0xff]
    %v60 = vld [vmem:[#allocation5 + $0x10] sm:$0xff]
    %v61 = vld [vmem:[#allocation5 + $0x18] sm:$0xff]
    %v62 = vld [vmem:[#allocation5 + $0x20] sm:$0xff]
    %v63 = vld [vmem:[#allocation5 + $0x28] sm:$0xff]
    %v64 = vld [vmem:[#allocation5 + $0x30] sm:$0xff]
    %v65 = vld [vmem:[#allocation5 + $0x38] sm:$0xff]
    %v66 = vld [vmem:[#allocation5 + $0x40] sm:$0xff]
    %v67 = vld [vmem:[#allocation5 + $0x48] sm:$0xff]
    %v68 = vld [vmem:[#allocation5 + $0x50] sm:$0xff]
    %v69 = vld [vmem:[#allocation5 + $0x58] sm:$0xff]
    %v70 = vld [vmem:[#allocation5 + $0x60] sm:$0xff]
    %v71 = vld [vmem:[#allocation5 + $0x68] sm:$0xff]
    %v72 = vld [vmem:[#allocation5 + $0x70] sm:$0xff]
    %v73 = vld [vmem:[#allocation5 + $0x78] sm:$0xff]
    %v74 = vld [vmem:[#allocation7] sm:$0xff]
    %v76 = vlaneseq
    %v77 = vshrl.u32 %v76, 7
    %v78 = vsub.s32 0, %v77
    %v79 = vrot.slane %v74, %v78
    %v80 = vlaneseq
    %v81 = vshrl.u32 %v80, 7
    %v82 = vsub.s32 1, %v81
    %v83 = vrot.slane %v74, %v82
    %v84 = vlaneseq
    %v85 = vshrl.u32 %v84, 7
    %v86 = vsub.s32 2, %v85
    %v87 = vrot.slane %v74, %v86
    %v88 = vlaneseq
    %v89 = vshrl.u32 %v88, 7
    %v90 = vsub.s32 3, %v89
    %v91 = vrot.slane %v74, %v90
    %v92 = vlaneseq
    %v93 = vshrl.u32 %v92, 7
    %v94 = vsub.s32 4, %v93
    %v95 = vrot.slane %v74, %v94
    %v96 = vlaneseq
    %v97 = vshrl.u32 %v96, 7
    %v98 = vsub.s32 5, %v97
    %v99 = vrot.slane %v74, %v98
    %v100 = vlaneseq
    %v101 = vshrl.u32 %v100, 7
    %v102 = vsub.s32 6, %v101
    %v103 = vrot.slane %v74, %v102
    %v104 = vlaneseq
    %v105 = vshrl.u32 %v104, 7
    %v106 = vsub.s32 7, %v105
    %v107 = vrot.slane %v74, %v106
    %v132 = vunpack.c.l.b16 %v58
    %v133 = vunpack.c.h.b16 %v58
    %v134 = vunpack.c.l.b16 %v59
    %v135 = vunpack.c.h.b16 %v59
    %v136 = vunpack.c.l.b16 %v60
    %v137 = vunpack.c.h.b16 %v60
    %v138 = vunpack.c.l.b16 %v61
    %v139 = vunpack.c.h.b16 %v61
    %v140 = vunpack.c.l.b16 %v62
    %v141 = vunpack.c.h.b16 %v62
    %v142 = vunpack.c.l.b16 %v63
    %v143 = vunpack.c.h.b16 %v63
    %v144 = vunpack.c.l.b16 %v64
    %v145 = vunpack.c.h.b16 %v64
    %v146 = vunpack.c.l.b16 %v65
    %v147 = vunpack.c.h.b16 %v65
    %v148 = vunpack.c.l.b16 %v66
    %v149 = vunpack.c.h.b16 %v66
    %v150 = vunpack.c.l.b16 %v67
    %v151 = vunpack.c.h.b16 %v67
    %v152 = vunpack.c.l.b16 %v68
    %v153 = vunpack.c.h.b16 %v68
    %v154 = vunpack.c.l.b16 %v69
    %v155 = vunpack.c.h.b16 %v69
    %v156 = vunpack.c.l.b16 %v70
    %v157 = vunpack.c.h.b16 %v70
    %v158 = vunpack.c.l.b16 %v71
    %v159 = vunpack.c.h.b16 %v71
    %v160 = vunpack.c.l.b16 %v72
    %v161 = vunpack.c.h.b16 %v72
    %v162 = vunpack.c.l.b16 %v73
    %v163 = vunpack.c.h.b16 %v73
    %v164 = vpack.c.b16 %v140, %v132
    %v165 = vpack.c.b16 %v141, %v133
    %v166 = vpack.c.b16 %v142, %v134
    %v167 = vpack.c.b16 %v143, %v135
    %v168 = vpack.c.b16 %v144, %v136
    %v169 = vpack.c.b16 %v145, %v137
    %v170 = vpack.c.b16 %v146, %v138
    %v171 = vpack.c.b16 %v147, %v139
    %v172 = vpack.c.b16 %v156, %v148
    %v173 = vpack.c.b16 %v157, %v149
    %v174 = vpack.c.b16 %v158, %v150
    %v175 = vpack.c.b16 %v159, %v151
    %v176 = vpack.c.b16 %v160, %v152
    %v177 = vpack.c.b16 %v161, %v153
    %v178 = vpack.c.b16 %v162, %v154
    %v179 = vpack.c.b16 %v163, %v155
    %vm196 = vcmask 261120
    %v198 = vsel %vm196, %v57, 0
    %200 = vmatprep.subr.bf16.mxu0 0
    %201 = vmatpush1.bf16.msra.mxu0 0
    %202 = vmatprep.subr.bf16.mxu0 0
    %203 = vmatpush1.bf16.msra.mxu0 0
    %204 = vmatprep.subr.bf16.mxu0 0
    %205 = vmatpush1.bf16.msra.mxu0 0
    %206 = vmatprep.subr.bf16.mxu0 0
    %207 = vmatpush1.bf16.msra.mxu0 0
    %208 = vmatprep.subr.bf16.mxu0 0
    %209 = vmatpush1.bf16.msra.mxu0 0
    %210 = vmatprep.subr.bf16.mxu0 0
    %211 = vmatpush1.bf16.msra.mxu0 0
    %212 = vmatprep.subr.bf16.mxu0 %v173
    %213 = vmatpush1.bf16.msra.mxu0 %v172
    %214 = vmatprep.subr.bf16.mxu0 %v165
    %215 = vmatpush1.bf16.msra.mxu0 %v164
    %216 = vmatprep.subr.bf16.mxu0 0
    %217 = vmatpush2.bf16.msra.mxu0 0
    %218 = vmatprep.subr.bf16.mxu0 0
    %219 = vmatpush2.bf16.msra.mxu0 0
    %220 = vmatprep.subr.bf16.mxu0 0
    %221 = vmatpush2.bf16.msra.mxu0 0
    %222 = vmatprep.subr.bf16.mxu0 0
    %223 = vmatpush2.bf16.msra.mxu0 0
    %224 = vmatprep.subr.bf16.mxu0 0
    %225 = vmatpush2.bf16.msra.mxu0 0
    %226 = vmatprep.subr.bf16.mxu0 0
    %227 = vmatpush2.bf16.msra.mxu0 0
    %228 = vmatprep.subr.bf16.mxu0 0
    %229 = vmatpush2.bf16.msra.mxu0 0
    %230 = vmatprep.subr.bf16.mxu0 0
    %231 = vmatpush2.bf16.msra.mxu0 0
    %232 = vmatprep.mubr.bf16.mxu0 0
    %233 = vmatmul.mubr.bf16.gmra.mxu0 %v198
    %v234 = vpop.f32.mrf.mxu0
    %v235 = vadd.f32 %v79, %v234
    %v236 = vpop.f32.mrf.mxu0
    %v237 = vadd.f32 %v83, %v236
    %v238 = vpop.f32.mrf.mxu0
    %v239 = vadd.f32 %v79, %v238
    %v240 = vpop.f32.mrf.mxu0
    %v241 = vadd.f32 %v83, %v240
    %242 = vdwg.mxu0
    %243 = vmatprep.subr.bf16.mxu0 0
    %244 = vmatpush1.bf16.msra.mxu0 0
    %245 = vmatprep.subr.bf16.mxu0 0
    %246 = vmatpush1.bf16.msra.mxu0 0
    %247 = vmatprep.subr.bf16.mxu0 0
    %248 = vmatpush1.bf16.msra.mxu0 0
    %249 = vmatprep.subr.bf16.mxu0 0
    %250 = vmatpush1.bf16.msra.mxu0 0
    %251 = vmatprep.subr.bf16.mxu0 0
    %252 = vmatpush1.bf16.msra.mxu0 0
    %253 = vmatprep.subr.bf16.mxu0 0
    %254 = vmatpush1.bf16.msra.mxu0 0
    %255 = vmatprep.subr.bf16.mxu0 %v175
    %256 = vmatpush1.bf16.msra.mxu0 %v174
    %257 = vmatprep.subr.bf16.mxu0 %v167
    %258 = vmatpush1.bf16.msra.mxu0 %v166
    %259 = vmatprep.subr.bf16.mxu0 0
    %260 = vmatpush2.bf16.msra.mxu0 0
    %261 = vmatprep.subr.bf16.mxu0 0
    %262 = vmatpush2.bf16.msra.mxu0 0
    %263 = vmatprep.subr.bf16.mxu0 0
    %264 = vmatpush2.bf16.msra.mxu0 0
    %265 = vmatprep.subr.bf16.mxu0 0
    %266 = vmatpush2.bf16.msra.mxu0 0
    %267 = vmatprep.subr.bf16.mxu0 0
    %268 = vmatpush2.bf16.msra.mxu0 0
    %269 = vmatprep.subr.bf16.mxu0 0
    %270 = vmatpush2.bf16.msra.mxu0 0
    %271 = vmatprep.subr.bf16.mxu0 0
    %272 = vmatpush2.bf16.msra.mxu0 0
    %273 = vmatprep.subr.bf16.mxu0 0
    %274 = vmatpush2.bf16.msra.mxu0 0
    %275 = vmatprep.mubr.bf16.mxu0 0
    %276 = vmatmul.mubr.bf16.gmra.mxu0 %v198
    %v277 = vpop.f32.mrf.mxu0
    %v278 = vadd.f32 %v87, %v277
    %v279 = vpop.f32.mrf.mxu0
    %v280 = vadd.f32 %v91, %v279
    %v281 = vpop.f32.mrf.mxu0
    %v282 = vadd.f32 %v87, %v281
    %v283 = vpop.f32.mrf.mxu0
    %v284 = vadd.f32 %v91, %v283
    %285 = vdwg.mxu0
    %286 = vmatprep.subr.bf16.mxu0 0
    %287 = vmatpush1.bf16.msra.mxu0 0
    %288 = vmatprep.subr.bf16.mxu0 0
    %289 = vmatpush1.bf16.msra.mxu0 0
    %290 = vmatprep.subr.bf16.mxu0 0
    %291 = vmatpush1.bf16.msra.mxu0 0
    %292 = vmatprep.subr.bf16.mxu0 0
    %293 = vmatpush1.bf16.msra.mxu0 0
    %294 = vmatprep.subr.bf16.mxu0 0
    %295 = vmatpush1.bf16.msra.mxu0 0
    %296 = vmatprep.subr.bf16.mxu0 0
    %297 = vmatpush1.bf16.msra.mxu0 0
    %298 = vmatprep.subr.bf16.mxu0 %v177
    %299 = vmatpush1.bf16.msra.mxu0 %v176
    %300 = vmatprep.subr.bf16.mxu0 %v169
    %301 = vmatpush1.bf16.msra.mxu0 %v168
    %302 = vmatprep.subr.bf16.mxu0 0
    %303 = vmatpush2.bf16.msra.mxu0 0
    %304 = vmatprep.subr.bf16.mxu0 0
    %305 = vmatpush2.bf16.msra.mxu0 0
    %306 = vmatprep.subr.bf16.mxu0 0
    %307 = vmatpush2.bf16.msra.mxu0 0
    %308 = vmatprep.subr.bf16.mxu0 0
    %309 = vmatpush2.bf16.msra.mxu0 0
    %310 = vmatprep.subr.bf16.mxu0 0
    %311 = vmatpush2.bf16.msra.mxu0 0
    %312 = vmatprep.subr.bf16.mxu0 0
    %313 = vmatpush2.bf16.msra.mxu0 0
    %314 = vmatprep.subr.bf16.mxu0 0
    %315 = vmatpush2.bf16.msra.mxu0 0
    %316 = vmatprep.subr.bf16.mxu0 0
    %317 = vmatpush2.bf16.msra.mxu0 0
    %318 = vmatprep.mubr.bf16.mxu0 0
    %319 = vmatmul.mubr.bf16.gmra.mxu0 %v198
    %v320 = vpop.f32.mrf.mxu0
    %v321 = vadd.f32 %v95, %v320
    %v322 = vpop.f32.mrf.mxu0
    %v323 = vadd.f32 %v99, %v322
    %v324 = vpop.f32.mrf.mxu0
    %v325 = vadd.f32 %v95, %v324
    %v326 = vpop.f32.mrf.mxu0
    %v327 = vadd.f32 %v99, %v326
    %328 = vdwg.mxu0
    %329 = vmatprep.subr.bf16.mxu0 0
    %330 = vmatpush1.bf16.msra.mxu0 0
    %331 = vmatprep.subr.bf16.mxu0 0
    %332 = vmatpush1.bf16.msra.mxu0 0
    %333 = vmatprep.subr.bf16.mxu0 0
    %334 = vmatpush1.bf16.msra.mxu0 0
    %335 = vmatprep.subr.bf16.mxu0 0
    %336 = vmatpush1.bf16.msra.mxu0 0
    %337 = vmatprep.subr.bf16.mxu0 0
    %338 = vmatpush1.bf16.msra.mxu0 0
    %339 = vmatprep.subr.bf16.mxu0 0
    %340 = vmatpush1.bf16.msra.mxu0 0
    %341 = vmatprep.subr.bf16.mxu0 %v179
    %342 = vmatpush1.bf16.msra.mxu0 %v178
    %343 = vmatprep.subr.bf16.mxu0 %v171
    %344 = vmatpush1.bf16.msra.mxu0 %v170
    %345 = vmatprep.subr.bf16.mxu0 0
    %346 = vmatpush2.bf16.msra.mxu0 0
    %347 = vmatprep.subr.bf16.mxu0 0
    %348 = vmatpush2.bf16.msra.mxu0 0
    %349 = vmatprep.subr.bf16.mxu0 0
    %350 = vmatpush2.bf16.msra.mxu0 0
    %351 = vmatprep.subr.bf16.mxu0 0
    %352 = vmatpush2.bf16.msra.mxu0 0
    %353 = vmatprep.subr.bf16.mxu0 0
    %354 = vmatpush2.bf16.msra.mxu0 0
    %355 = vmatprep.subr.bf16.mxu0 0
    %356 = vmatpush2.bf16.msra.mxu0 0
    %357 = vmatprep.subr.bf16.mxu0 0
    %358 = vmatpush2.bf16.msra.mxu0 0
    %359 = vmatprep.subr.bf16.mxu0 0
    %360 = vmatpush2.bf16.msra.mxu0 0
    %361 = vmatprep.mubr.bf16.mxu0 0
    %362 = vmatmul.mubr.bf16.gmra.mxu0 %v198
    %v363 = vpop.f32.mrf.mxu0
    %v364 = vadd.f32 %v103, %v363
    %v365 = vpop.f32.mrf.mxu0
    %v366 = vadd.f32 %v107, %v365
    %v367 = vpop.f32.mrf.mxu0
    %v368 = vadd.f32 %v103, %v367
    %v369 = vpop.f32.mrf.mxu0
    %v370 = vadd.f32 %v107, %v369
    %371 = vdwg.mxu0
    %v372 = vmax.f32 %v235, 0.0
    %v373 = vmax.f32 %v237, 0.0
    %v374 = vmax.f32 %v278, 0.0
    %v375 = vmax.f32 %v280, 0.0
    %v376 = vmax.f32 %v321, 0.0
    %v377 = vmax.f32 %v323, 0.0
    %v378 = vmax.f32 %v364, 0.0
    %v379 = vmax.f32 %v366, 0.0
    %v380 = vmax.f32 %v239, 0.0
    %v381 = vmax.f32 %v241, 0.0
    %v382 = vmax.f32 %v282, 0.0
    %v383 = vmax.f32 %v284, 0.0
    %v384 = vmax.f32 %v325, 0.0
    %v385 = vmax.f32 %v327, 0.0
    %v386 = vmax.f32 %v368, 0.0
    %v387 = vmax.f32 %v370, 0.0
    %388 = vst [vmem:[#allocation8] sm:$0xff] %v372
    %389 = vst [vmem:[#allocation8 + $0x8] sm:$0xff] %v373
    %390 = vst [vmem:[#allocation8 + $0x10] sm:$0xff] %v374
    %391 = vst [vmem:[#allocation8 + $0x18] sm:$0xff] %v375
    %392 = vst [vmem:[#allocation8 + $0x20] sm:$0xff] %v376
    %393 = vst [vmem:[#allocation8 + $0x28] sm:$0xff] %v377
    %394 = vst [vmem:[#allocation8 + $0x30] sm:$0xff] %v378
    %395 = vst [vmem:[#allocation8 + $0x38] sm:$0xff] %v379
    %396 = vst [vmem:[#allocation8 + $0x40] sm:$0xff] %v380
    %397 = vst [vmem:[#allocation8 + $0x48] sm:$0xff] %v381
    %398 = vst [vmem:[#allocation8 + $0x50] sm:$0xff] %v382
    %399 = vst [vmem:[#allocation8 + $0x58] sm:$0xff] %v383
    %400 = vst [vmem:[#allocation8 + $0x60] sm:$0xff] %v384
    %401 = vst [vmem:[#allocation8 + $0x68] sm:$0xff] %v385
    %402 = vst [vmem:[#allocation8 + $0x70] sm:$0xff] %v386
    %403 = vst [vmem:[#allocation8 + $0x78] sm:$0xff] %v387
    // Predicated region
    $region26: #{tpu_custom_call.1} parent=1 // pred_check
      _
    $region27: #{tpu_custom_call.1} parent=1 // pred_check_branch
      %405 = sbr.rel (0) target = $region29
    $region28: #{tpu_custom_call.1} parent=1 // pred_region
      %s407 = ssub.s32 2048, 2048
      %408 = vsyncadd [#allocation4], %s407
      %s409 = sshll.u32 [#allocation8], 4
      %s410 = int_to_ptr.vmem [resolvable:$true] %s409
      %415 = dma.vmem_to_hbm [thread:$0]  %s410, 2048, %s3, [#allocation4], 1024, 1024, 64
    $region29: #{tpu_custom_call.1} parent=1 // pred_fallthru
      _
    // Predicated region
    $region30: #{tpu_custom_call.1} parent=1 // pred_check
      _
    $region31: #{tpu_custom_call.1} parent=1 // pred_check_branch
      %417 = sbr.rel (0) target = $region33
    $region32: #{tpu_custom_call.1} parent=1 // pred_region
      %418 = dma.done [#allocation4], 2048
    $region33: #{tpu_custom_call.1} parent=1 // pred_fallthru
      _
    %419 = vsyncpa [#allocation3], 1
    %420 = vsyncpa [#allocation6], 1
    %421 = vsyncpa [#allocation4], 1

</llo_original>
